<compile_context>
chip_gen: v6e
topology: v6e:2x2x1
jax: 0.10.0
libtpu: 0.0.40
codegen_flags: <defaults>
</compile_context>

<pallas_src>
import math

import jax
import jax.numpy as jnp
from jax import lax
from jax.experimental import pallas as pl
from jax.experimental.pallas import tpu as pltpu

# sigma_1 = sqrt(min_variance) with the repo default min_variance = 1e-6.
SIGMA_1 = 1e-3
_LOG_SIGMA_1 = math.log(SIGMA_1)

_LANE = 128
_SUBLANE = 8
_MAX_LANE_TILE = 512       # 512 x 512 f32 = 1 MiB per stream per buffer
_MAX_SUBLANE_TILE = 512

_HAS_STATEFUL_NORMAL = hasattr(pltpu, "stateful_normal")


# --------------------------------------------------------------------------
# In-kernel Gaussian sampling (only used when the Mosaic hardware PRNG is
# available — never traced on the CPU / interpret fallback path).
# --------------------------------------------------------------------------
def _standard_normal(shape):
    """f32 standard-normal samples from the (already seeded) stateful TPU PRNG."""
    if _HAS_STATEFUL_NORMAL:
        return pltpu.stateful_normal(shape, jnp.float32)

    # Box-Muller fallback.  Uses BOTH outputs of each (r, theta) pair so the
    # EUP transcendental + PRNG cost is halved vs. the cos-only variant.
    def _uniform01(bits):
        if bits.dtype != jnp.uint32:
            bits = pltpu.bitcast(bits, jnp.uint32)
        one_to_two = pltpu.bitcast((bits >> 9) | jnp.uint32(0x3F800000),
                                   jnp.float32)           # [1, 2)
        return one_to_two - 1.0                            # [0, 1)

    rows, cols = shape
    if rows % 2 == 0:
        half = (rows // 2, cols)
        u1 = _uniform01(pltpu.prng_random_bits(half))
        u2 = _uniform01(pltpu.prng_random_bits(half))
        r = jnp.sqrt(-2.0 * jnp.log(1.0 - u1))              # 1-u1 in (0, 1]
        theta = (2.0 * math.pi) * u2
        return jnp.concatenate([r * jnp.cos(theta), r * jnp.sin(theta)], axis=0)

    # Odd row count (rare): fall back to the cos-only variant.
    u1 = _uniform01(pltpu.prng_random_bits(shape))
    u2 = _uniform01(pltpu.prng_random_bits(shape))
    r = jnp.sqrt(-2.0 * jnp.log(1.0 - u1))
    return r * jnp.cos((2.0 * math.pi) * u2)


# --------------------------------------------------------------------------
# Kernels
# --------------------------------------------------------------------------
def _flow_kernel_hw_prng(gamma_ref, std_ref, seed_ref, x_ref, mean_ref):
    """mean = gamma * x + std * N(0,1), noise drawn in-kernel (no eps stream).

    gamma_ref, std_ref : SMEM (B,) f32   per-sample scalars (scalar prefetch)
    seed_ref           : SMEM (1,) i32   mixed base RNG seed
    x_ref, mean_ref    : VMEM (TM, L)    data block / output block
    """
    b = pl.program_id(0)
    rb = pl.program_id(1)
    # Unique PRNG stream per (sample, row-block); seed already mixed upstream.
    pltpu.prng_seed(seed_ref[0] + b * pl.num_programs(1) + rb)
    eps = _standard_normal(mean_ref.shape)

    gamma = gamma_ref[b]
    std = std_ref[b]
    x = x_ref[...].astype(jnp.float32)
    mean_ref[...] = (gamma * x + std * eps).astype(mean_ref.dtype)


def _flow_kernel_streamed_noise(gamma_ref, std_ref, x_ref, eps_ref, mean_ref):
    """mean = gamma * x + std * eps with eps streamed from HBM (portable path)."""
    b = pl.program_id(0)
    gamma = gamma_ref[b]
    std = std_ref[b]
    x = x_ref[...].astype(jnp.float32)
    eps = eps_ref[...].astype(jnp.float32)
    mean_ref[...] = (gamma * x + std * eps).astype(mean_ref.dtype)


# --------------------------------------------------------------------------
# Capability probe: does the TPU stateful PRNG lower on this backend?
# --------------------------------------------------------------------------
_IN_KERNEL_PRNG = None


def _probe_kernel(o_ref):
    pltpu.prng_seed(0)
    o_ref[...] = _standard_normal(o_ref.shape)


def _in_kernel_prng_available():
    global _IN_KERNEL_PRNG
    if _IN_KERNEL_PRNG is None:
        try:
            out = pl.pallas_call(
                _probe_kernel,
                out_shape=jax.ShapeDtypeStruct((_SUBLANE, _LANE), jnp.float32),
            )()
            jax.block_until_ready(out)
            _IN_KERNEL_PRNG = bool(jnp.all(jnp.isfinite(out)))
        except Exception:
            # No Mosaic lowering for the hardware PRNG (CPU / interpret mode).
            _IN_KERNEL_PRNG = False
    return _IN_KERNEL_PRNG


# --------------------------------------------------------------------------
# Layout: (B, N) flat features -> (B, R, L) with L on the lane axis.
# --------------------------------------------------------------------------
def _round_up(x, m):
    return (x + m - 1) // m * m


def _choose_layout(N, lane_tile=_MAX_LANE_TILE, sublane_tile=_MAX_SUBLANE_TILE):
    """L = largest multiple-of-128 divisor of N_pad (<= lane_tile); no row pad."""
    N_pad = N if N % _LANE == 0 else _round_up(N, _LANE)
    L = _LANE
    for cand in range(min(lane_tile, N_pad) // _LANE * _LANE, _LANE - 1, -_LANE):
        if N_pad % cand == 0:
            L = cand
            break
    R = N_pad // L
    if R <= sublane_tile:
        TM = R                       # full-dim block: always layout-legal
    else:
        TM = sublane_tile            # multiple of 8; last block may be ragged
    return N_pad, L, R, TM


# --------------------------------------------------------------------------
# Wrapper: CtsBayesianFlow.forward
# --------------------------------------------------------------------------
def bayesian_flow_forward(data, t, seed=0, *, rng_key=None):
    """data: (B, C, H, W); t: (B,) in [0, 1).  Returns (mean, None)."""
    B = data.shape[0]
    N = int(math.prod(data.shape[1:]))
    out_dtype = data.dtype

    # Per-sample scalars, hoisted out of the per-tile body.
    t32 = t.reshape(B).astype(jnp.float32)
    post_var = jnp.exp(2.0 * t32 * _LOG_SIGMA_1)           # sigma_1 ** (2 t)
    gamma = 1.0 - post_var
    std = jnp.sqrt(gamma * post_var)

    # Lane/sublane-dense view, no pad on typical shapes (N % 128 == 0).
    N_pad, L, R, TM = _choose_layout(N)
    x = data.reshape(B, N)
    if N_pad != N:                    # rare fallback for N not a multiple of 128
        x = jnp.pad(x, ((0, 0), (0, N_pad - N)))
    x = x.reshape(B, R, L)

    grid = (B, pl.cdiv(R, TM))
    block = pl.BlockSpec((None, TM, L), lambda b, rb, *_: (b, rb, 0))
    n_elems = B * R * L
    io_bytes = n_elems * (x.dtype.itemsize + jnp.dtype(out_dtype).itemsize)

    if _in_kernel_prng_available():
        # Hardware-PRNG path: no eps stream in HBM at all.
        seed_mixed = lax.bitcast_convert_type(
            jnp.asarray([seed], jnp.uint32) * jnp.uint32(2654435761), jnp.int32)
        kernel = _flow_kernel_hw_prng
        scalar_args = (gamma, std, seed_mixed)
        tensor_args = (x,)
        in_specs = [block]
        cost = pl.CostEstimate(flops=3 * n_elems, transcendentals=2 * n_elems,
                               bytes_accessed=io_bytes)
    else:
        # TODO(synk): the in-kernel TPU hardware PRNG (above) removes this eps
        # stream on real TPUs; it has no CPU/interpret lowering, so here the
        # noise is generated upstream exactly like torch.randn_like(data).
        if rng_key is None:
            rng_key = jax.random.PRNGKey(seed)
        eps = jax.random.normal(rng_key, (B, R, L), dtype=jnp.float32)
        eps = eps.astype(out_dtype)
        kernel = _flow_kernel_streamed_noise
        scalar_args = (gamma, std)
        tensor_args = (x, eps)
        in_specs = [block, block]
        cost = pl.CostEstimate(flops=3 * n_elems, transcendentals=0,
                               bytes_accessed=io_bytes + eps.size * eps.dtype.itemsize)

    mean3 = pl.pallas_call(
        kernel,
        out_shape=jax.ShapeDtypeStruct((B, R, L), out_dtype),
        grid_spec=pltpu.PrefetchScalarGridSpec(
            num_scalar_prefetch=len(scalar_args),
            grid=grid,
            in_specs=in_specs,
            out_specs=block,
        ),
        compiler_params=pltpu.CompilerParams(
            # NOTE: on v7x, pltpu.CORE_PARALLEL on the row-block axis is what
            # actually splits work across the two TensorCores; plain "parallel"
            # is sufficient on single-TC v5e / v6e.
            dimension_semantics=("parallel", "parallel")),
        cost_estimate=cost,
    )(*scalar_args, *tensor_args)

    if N_pad == N:
        mean = mean3.reshape(data.shape)
    else:
        mean = mean3.reshape(B, N_pad)[:, :N].reshape(data.shape)

    # CtsBayesianFlow.forward returns (mean, None): the precision term is not
    # used by the network during training.
    return mean, None


# TODO(synk): the other abstract methods (get_prior_input_params, get_alpha,
# get_sender_dist, update_input_params, params_to_net_inputs) construct
# torch.distributions objects / sampling schedules with no single hot-path
# kernel; only forward() is implemented as a Pallas kernel here.

if __name__ == "__main__":
    key = jax.random.PRNGKey(0)
    k_data, k_t = jax.random.split(key)

    B, C, H, W = 2, 4, 16, 16
    data = jax.random.normal(k_data, (B, C, H, W), dtype=jnp.float32)
    # Keep t away from the t=0 endpoint so std > 0 for the noise-recovery check.
    t = jax.random.uniform(k_t, (B,), dtype=jnp.float32, minval=0.05, maxval=0.95)

    mean, precision = bayesian_flow_forward(data, t, seed=0)
    mean = jax.block_until_ready(mean)

    assert mean.shape == (B, C, H, W)
    assert precision is None
    assert not bool(jnp.any(jnp.isnan(mean)))

    # Deterministic-part check: recover the noise and verify it is ~N(0, 1).
    post_var = jnp.power(SIGMA_1, 2.0 * t).reshape(B, 1, 1, 1)
    gamma = 1.0 - post_var
    std = jnp.sqrt(gamma * post_var)
    z = (mean - gamma * data) / std
    assert abs(float(z.mean())) < 0.15, float(z.mean())
    assert 0.8 < float(z.std()) < 1.2, float(z.std())
    # Different samples get different noise.
    assert not bool(jnp.allclose(z[0], z[1]))

    # Same seed -> identical output (deterministic RNG on both paths).
    mean2, _ = bayesian_flow_forward(data, t, seed=0)
    assert bool(jnp.array_equal(mean, jax.block_until_ready(mean2)))

    print("KERNEL_OK")
</pallas_src>

<mosaic_0001>
module attributes {stable_mosaic.version = 11 : i64} {
  func.func @_flow_kernel_streamed_noise(%arg0: i32, %arg1: i32, %arg2: memref<2xf32, #tpu.memory_space<smem>>, %arg3: memref<2xf32, #tpu.memory_space<smem>>, %arg4: memref<1x2x512xf32, #tpu.memory_space<vmem>>, %arg5: memref<1x2x512xf32, #tpu.memory_space<vmem>>, %arg6: memref<1x2x512xf32, #tpu.memory_space<vmem>>) attributes {dimension_semantics = [#tpu.dimension_semantics<parallel>, #tpu.dimension_semantics<parallel>], iteration_bounds = array<i64: 2, 1>, scalar_prefetch = 2 : i64, scratch_operands = 0 : i64, tpu.core_type = #tpu.core_type<tc>, window_params = [{transform_indices = @transform_0, window_bounds = array<i64: 1, 2, 512>}, {transform_indices = @transform_1, window_bounds = array<i64: 1, 2, 512>}, {transform_indices = @transform_2, window_bounds = array<i64: 1, 2, 512>}]} {
    %0 = arith.index_cast %arg0 : i32 to index
    %1 = memref.load %arg2[%0] : memref<2xf32, #tpu.memory_space<smem>>
    %2 = arith.index_cast %arg0 : i32 to index
    %3 = memref.load %arg3[%2] : memref<2xf32, #tpu.memory_space<smem>>
    %c0 = arith.constant 0 : index
    %c0_0 = arith.constant 0 : index
    %c0_1 = arith.constant 0 : index
    %4 = vector.load %arg4[%c0, %c0_0, %c0_1] : memref<1x2x512xf32, #tpu.memory_space<vmem>>, vector<1x2x512xf32>
    %5 = vector.shape_cast %4 : vector<1x2x512xf32> to vector<2x512xf32>
    %c0_2 = arith.constant 0 : index
    %c0_3 = arith.constant 0 : index
    %c0_4 = arith.constant 0 : index
    %6 = vector.load %arg5[%c0_2, %c0_3, %c0_4] : memref<1x2x512xf32, #tpu.memory_space<vmem>>, vector<1x2x512xf32>
    %7 = vector.shape_cast %6 : vector<1x2x512xf32> to vector<2x512xf32>
    %8 = vector.broadcast %1 : f32 to vector<2x512xf32>
    %9 = arith.mulf %8, %5 : vector<2x512xf32>
    %10 = vector.broadcast %3 : f32 to vector<2x512xf32>
    %11 = arith.mulf %10, %7 : vector<2x512xf32>
    %12 = arith.addf %9, %11 : vector<2x512xf32>
    %c0_5 = arith.constant 0 : index
    %c0_6 = arith.constant 0 : index
    %c0_7 = arith.constant 0 : index
    %13 = vector.load %arg6[%c0_5, %c0_6, %c0_7] : memref<1x2x512xf32, #tpu.memory_space<vmem>>, vector<1x2x512xf32>
    %14 = vector.shape_cast %13 : vector<1x2x512xf32> to vector<2x512xf32>
    %15 = vector.shape_cast %12 : vector<2x512xf32> to vector<1x2x512xf32>
    tpu.vector_store %arg6[%c0_5, %c0_6, %c0_7], %15 {strides = array<i32>} : memref<1x2x512xf32, #tpu.memory_space<vmem>>, vector<1x2x512xf32>,
    return
  }
  func.func @transform_0(%arg0: i32, %arg1: i32, %arg2: memref<2xf32, #tpu.memory_space<smem>>, %arg3: memref<2xf32, #tpu.memory_space<smem>>) -> (i32, i32, i32) {
    %c0_i32 = arith.constant 0 : i32
    %c0_i32_0 = arith.constant 0 : i32
    return %arg0, %arg1, %c0_i32 : i32, i32, i32
  }
  func.func @transform_1(%arg0: i32, %arg1: i32, %arg2: memref<2xf32, #tpu.memory_space<smem>>, %arg3: memref<2xf32, #tpu.memory_space<smem>>) -> (i32, i32, i32) {
    %c0_i32 = arith.constant 0 : i32
    %c0_i32_0 = arith.constant 0 : i32
    return %arg0, %arg1, %c0_i32 : i32, i32, i32
  }
  func.func @transform_2(%arg0: i32, %arg1: i32, %arg2: memref<2xf32, #tpu.memory_space<smem>>, %arg3: memref<2xf32, #tpu.memory_space<smem>>) -> (i32, i32, i32) {
    %c0_i32 = arith.constant 0 : i32
    %c0_i32_0 = arith.constant 0 : i32
    return %arg0, %arg1, %c0_i32 : i32, i32, i32
  }
}

</mosaic_0001>

<llo_original>
// kernel: tpu_custom_call.1
$region0: #{tpu_custom_call.1}
  #allocation0 [shape = 'u32[]', space=smem, size = 0x4, offset = 0x4, fixed_abs, tag = 'smem constant byte address 0x4 - core index']
  #allocation1 [shape = 'u32[144,128]{1,0:T(1,128)}', space=vmem, size = 0x12000, scoped, tag = 'internal scratch']
  #allocation2 [shape = 's32[1]{0}', space=sflag, size = 0x4, scoped, tag = 'scoped memory for tpu_custom_call.1']
  #allocation3 [shape = 'u8[512]{0}', space=smem, size = 0x200, scoped, tag = 'prefetched SMEM operand 0']
  #allocation4 [shape = 'u8[512]{0}', space=smem, size = 0x200, scoped, tag = 'prefetched SMEM operand 1']
  %s0 = inlined_call_operand.hbm [shape: f32[2], index: 0, kind: input, shape index: {}]
  %s1 = inlined_call_operand.vmem [shape: f32[2], index: 1, kind: input, shape index: {}]
  %s2 = inlined_call_operand.hbm [shape: f32[2,2,512], index: 2, kind: input, shape index: {}]
  %s3 = inlined_call_operand.hbm [shape: f32[2,2,512], index: 3, kind: input, shape index: {}]
  %s4 = inlined_call_operand.hbm [shape: f32[2,2,512], index: 4, kind: output, shape index: {}]
  %s5 = sld [smem:[#allocation0]]
  $region49: #{tpu_custom_call.1} parent=0
    _
  %s7 = ssub.s32 1, %s5
  %s8 = scalar_select 0, %s7, %s5
  %10 = dma.hbm_to_smem %s0, 16, [#allocation3], [#allocation2]
  %s11 = sshll.u32 %s1, 4
  %s12 = int_to_ptr.vmem [resolvable:$true] %s11
  %14 = dma.vmem_to_smem %s12, 16, [#allocation4], [#allocation2]
  %15 = dma.done [#allocation2], 32
  %16 = sfence
  $region1: #{tpu_custom_call.1} parent=0
    #allocation5 [shape = 'u8[8192]{0}', space=vmem, size = 0x2000, scoped, tag = 'input window, operand 2']
    #allocation6 [shape = 's32[2]{0}', space=sflag, size = 0x8, scoped, tag = 'scoped memory for tpu_custom_call.1']
    #allocation7 [shape = 's32[2]{0}', space=sflag, size = 0x8, scoped, tag = 'scoped memory for tpu_custom_call.1']
    #allocation8 [shape = 'u8[8192]{0}', space=vmem, size = 0x2000, scoped, tag = 'input window, operand 3']
    #allocation9 [shape = 's32[2]{0}', space=sflag, size = 0x8, scoped, tag = 'scoped memory for tpu_custom_call.1']
    #allocation10 [shape = 'u8[8192]{0}', space=vmem, size = 0x2000, scoped, tag = 'output window, operand 0']
    %17 = vsyncpa [#allocation6], 0
    %s18 = scalar_lea.sflag [#allocation6], 1
    %19 = vsyncpa %s18, 0
    %20 = vsyncpa [#allocation9], 0
    %s21 = scalar_lea.sflag [#allocation9], 1
    %22 = vsyncpa %s21, 0
    %23 = vsyncpa [#allocation7], 0
    %s24 = scalar_lea.sflag [#allocation7], 1
    %25 = vsyncpa %s24, 0
    loop: start=0, step=1, limit=4
    $region2: #{tpu_custom_call.1} parent=1 // loop_pre_header
      _
    $region3: #{tpu_custom_call.1} parent=1 // loop_header
      %s27 = sphi 0, %s31
      %p28 = scmp.ge.s32.totalorder %s27, 4
      %s34 = sphi 0, %s46
      %s35 = sphi 0, %s42
      %s36 = sphi 0, %s34
      %s37 = sphi 0, %s35
      %s38 = sphi 0, %s36
      %s39 = sphi 0, %s37
      %s51 = sphi 0, %s53
      %s54 = sphi 0, %s51
      %s55 = sphi 0, %s54
      %s71 = sphi 0, %s55
      %s79 = sphi 0, %s81
      %s82 = sphi 0, %s79
      %s83 = sphi 0, %s82
      %s99 = sphi 0, %s83
      %s107 = sphi 0, %s109
      %s110 = sphi 0, %s107
      %s111 = sphi 0, %s110
      %s127 = sphi 0, %s111
    $region4: #{tpu_custom_call.1} parent=1 // loop_header_branch
      %30 = sbr.rel (%p28) target = $region8
    $region5: #{tpu_custom_call.1} parent=1 // loop_body
      %s32 = ssub.s32 %s27, 1
      %s33 = ssub.s32 %s27, 2
      %s40 = sadd.s32 1, %s35
      %p41 = scmp.ge.s32.totalorder %s40, 1
      %s42 = scalar_select %p41, 0, %s40
      %s43 = sadd.s32 1, %s34
      %s44 = scalar_select %p41, %s43, %s34
      %p45 = scmp.ge.s32.totalorder %s44, 2
      %s46 = scalar_select %p45, 0, %s44
      %s47 = ssub.s32 %s34, %s46
      %s48 = ssub.s32 %s35, %s42
      %s49 = sor.u32 %s47, %s48
      %p50 = scmp.eq.s32.totalorder %s49, 0
      %s52 = sadd.s32 %s51, 1
      %s53 = scalar_select %p50, %s51, %s52
      %p56 = pneg %p50
      %p57 = scmp.eq.s32.totalorder %s27, 1
      %p58 = por %p56, %p57
      %p59 = scmp.ne.s32.totalorder %s51, %s54
      %p60 = scmp.eq.s32.totalorder %s27, 0
      %p61 = por %p59, %p60
      %p62 = scmp.ne.s32.totalorder %s51, %s54
      %p63 = scmp.eq.s32.totalorder %s32, 1
      %p64 = por %p62, %p63
      %p65 = scmp.ne.s32.totalorder %s54, %s55
      %p66 = scmp.eq.s32.totalorder %s32, 0
      %p67 = por %p65, %p66
      %p68 = scmp.ne.s32.totalorder %s54, %s55
      %p69 = scmp.eq.s32.totalorder %s33, 1
      %p70 = por %p68, %p69
      %p72 = scmp.ne.s32.totalorder %s55, %s71
      %p73 = scmp.eq.s32.totalorder %s33, 0
      %p74 = por %p72, %p73
      %s75 = ssub.s32 %s34, %s46
      %s76 = ssub.s32 %s35, %s42
      %s77 = sor.u32 %s75, %s76
      %p78 = scmp.eq.s32.totalorder %s77, 0
      %s80 = sadd.s32 %s79, 1
      %s81 = scalar_select %p78, %s79, %s80
      %p84 = pneg %p78
      %p85 = scmp.eq.s32.totalorder %s27, 1
      %p86 = por %p84, %p85
      %p87 = scmp.ne.s32.totalorder %s79, %s82
      %p88 = scmp.eq.s32.totalorder %s27, 0
      %p89 = por %p87, %p88
      %p90 = scmp.ne.s32.totalorder %s79, %s82
      %p91 = scmp.eq.s32.totalorder %s32, 1
      %p92 = por %p90, %p91
      %p93 = scmp.ne.s32.totalorder %s82, %s83
      %p94 = scmp.eq.s32.totalorder %s32, 0
      %p95 = por %p93, %p94
      %p96 = scmp.ne.s32.totalorder %s82, %s83
      %p97 = scmp.eq.s32.totalorder %s33, 1
      %p98 = por %p96, %p97
      %p100 = scmp.ne.s32.totalorder %s83, %s99
      %p101 = scmp.eq.s32.totalorder %s33, 0
      %p102 = por %p100, %p101
      %s103 = ssub.s32 %s34, %s46
      %s104 = ssub.s32 %s35, %s42
      %s105 = sor.u32 %s103, %s104
      %p106 = scmp.eq.s32.totalorder %s105, 0
      %s108 = sadd.s32 %s107, 1
      %s109 = scalar_select %p106, %s107, %s108
      %p112 = pneg %p106
      %p113 = scmp.eq.s32.totalorder %s27, 1
      %p114 = por %p112, %p113
      %p115 = scmp.ne.s32.totalorder %s107, %s110
      %p116 = scmp.eq.s32.totalorder %s27, 0
      %p117 = por %p115, %p116
      %p118 = scmp.ne.s32.totalorder %s107, %s110
      %p119 = scmp.eq.s32.totalorder %s32, 1
      %p120 = por %p118, %p119
      %p121 = scmp.ne.s32.totalorder %s110, %s111
      %p122 = scmp.eq.s32.totalorder %s32, 0
      %p123 = por %p121, %p122
      %p124 = scmp.ne.s32.totalorder %s110, %s111
      %p125 = scmp.eq.s32.totalorder %s33, 1
      %p126 = por %p124, %p125
      %p128 = scmp.ne.s32.totalorder %s111, %s127
      %p129 = scmp.eq.s32.totalorder %s33, 0
      %p130 = por %p128, %p129
      %p131 = scmp.le.s32.totalorder 1, %s27
      %p132 = scmp.lt.s32.totalorder %s27, 3
      %p133 = pnand %p131, %p132
      %p134 = pneg %p133
      // Predicated region
      $region9: #{tpu_custom_call.1} parent=5 // pred_check
        _
      $region10: #{tpu_custom_call.1} parent=5 // pred_check_branch
        %136 = sbr.rel (%p133) target = $region12
      $region11: #{tpu_custom_call.1} parent=5 // pred_region
        %s137 = ssub.s32 %s27, 1
      $region12: #{tpu_custom_call.1} parent=5 // pred_fallthru
        _
      %p138 = scmp.lt.s32.totalorder %s27, 2
      // Predicated region
      $region13: #{tpu_custom_call.1} parent=5 // pred_check
        %p139 = pneg %p138
      $region14: #{tpu_custom_call.1} parent=5 // pred_check_branch
        %141 = sbr.rel (%p139) target = $region16
      $region15: #{tpu_custom_call.1} parent=5 // pred_region
        // Predicated region
        $region17: #{tpu_custom_call.1} parent=15 // pred_check
          %p142 = pneg %p61
        $region18: #{tpu_custom_call.1} parent=15 // pred_check_branch
          %144 = sbr.rel (%p142) target = $region20
        $region19: #{tpu_custom_call.1} parent=15 // pred_region
          %s145 = sand.u32 %s51, 1
          %s146 = scalar_lea.sflag [#allocation6], %s145
          %s147 = sand.u32 %s51, 1
          %s148 = smul.addr %s147, 8
          %s149 = scalar_lea.vmem [#allocation5], %s148
          %s151 = ssub.s32 128, 128
          %152 = vsyncadd %s146, %s151
          %s153 = smul.addr %s35, 4
          %s154 = smul.addr %s34, 4
          %s155 = sadd.s32 %s153, %s154
          %s156 = smul.addr %s155, 32
          %s157 = scalar_lea.hbm %s2, %s156
          %s159 = sshll.u32 %s149, 4
          %s160 = int_to_ptr.vmem [resolvable:$true] %s159
          %162 = dma.hbm_to_vmem [thread:$0]  %s157, 128, %s160, %s146
        $region20: #{tpu_custom_call.1} parent=15 // pred_fallthru
          _
        // Predicated region
        $region21: #{tpu_custom_call.1} parent=15 // pred_check
          %p163 = pneg %p89
        $region22: #{tpu_custom_call.1} parent=15 // pred_check_branch
          %165 = sbr.rel (%p163) target = $region24
        $region23: #{tpu_custom_call.1} parent=15 // pred_region
          %s166 = sand.u32 %s79, 1
          %s167 = scalar_lea.sflag [#allocation9], %s166
          %s168 = sand.u32 %s79, 1
          %s169 = smul.addr %s168, 8
          %s170 = scalar_lea.vmem [#allocation8], %s169
          %s172 = ssub.s32 128, 128
          %173 = vsyncadd %s167, %s172
          %s174 = smul.addr %s35, 4
          %s175 = smul.addr %s34, 4
          %s176 = sadd.s32 %s174, %s175
          %s177 = smul.addr %s176, 32
          %s178 = scalar_lea.hbm %s3, %s177
          %s180 = sshll.u32 %s170, 4
          %s181 = int_to_ptr.vmem [resolvable:$true] %s180
          %183 = dma.hbm_to_vmem [thread:$0]  %s178, 128, %s181, %s167
        $region24: #{tpu_custom_call.1} parent=15 // pred_fallthru
          _
      $region16: #{tpu_custom_call.1} parent=5 // pred_fallthru
        _
      %p184 = scmp.le.s32.totalorder 1, %s27
      %p185 = scmp.lt.s32.totalorder %s27, 3
      %p186 = pnand %p184, %p185
      %p187 = pneg %p186
      // Predicated region
      $region25: #{tpu_custom_call.1} parent=5 // pred_check
        _
      $region26: #{tpu_custom_call.1} parent=5 // pred_check_branch
        %189 = sbr.rel (%p186) target = $region28
      $region27: #{tpu_custom_call.1} parent=5 // pred_region
        %s190 = ssub.s32 %s27, 1
        %s191 = sand.u32 %s54, 1
        %s192 = scalar_lea.sflag [#allocation6], %s191
        %s193 = sand.u32 %s54, 1
        %s194 = smul.addr %s193, 8
        %s195 = scalar_lea.vmem [#allocation5], %s194
        // Predicated region
        $region29: #{tpu_custom_call.1} parent=27 // pred_check
          %p196 = pneg %p67
        $region30: #{tpu_custom_call.1} parent=27 // pred_check_branch
          %198 = sbr.rel (%p196) target = $region32
        $region31: #{tpu_custom_call.1} parent=27 // pred_region
          %199 = dma.done %s192, 128
        $region32: #{tpu_custom_call.1} parent=27 // pred_fallthru
          _
        %s200 = sand.u32 %s82, 1
        %s201 = scalar_lea.sflag [#allocation9], %s200
        %s202 = sand.u32 %s82, 1
        %s203 = smul.addr %s202, 8
        %s204 = scalar_lea.vmem [#allocation8], %s203
        // Predicated region
        $region33: #{tpu_custom_call.1} parent=27 // pred_check
          %p205 = pneg %p95
        $region34: #{tpu_custom_call.1} parent=27 // pred_check_branch
          %207 = sbr.rel (%p205) target = $region36
        $region35: #{tpu_custom_call.1} parent=27 // pred_region
          %208 = dma.done %s201, 128
        $region36: #{tpu_custom_call.1} parent=27 // pred_fallthru
          _
        %s209 = sand.u32 %s54, 1
        %s210 = scalar_lea.sflag [#allocation6], %s209
        %s211 = sand.u32 %s54, 1
        %s212 = smul.addr %s211, 8
        %s213 = scalar_lea.vmem [#allocation5], %s212
        %p214 = pneg %p67
        %p215 = pneg %p64
        %s216 = sand.u32 %s82, 1
        %s217 = scalar_lea.sflag [#allocation9], %s216
        %s218 = sand.u32 %s82, 1
        %s219 = smul.addr %s218, 8
        %s220 = scalar_lea.vmem [#allocation8], %s219
        %p221 = pneg %p95
        %p222 = pneg %p92
        %p223 = pneg %p123
        %p224 = pneg %p120
        %s225 = sand.u32 %s110, 1
        %s226 = scalar_lea.sflag [#allocation7], %s225
        %s227 = sand.u32 %s110, 1
        %s228 = smul.addr %s227, 8
        %s229 = scalar_lea.vmem [#allocation10], %s228
        %s230 = sld [smem:[#allocation3 + %s36]]
        %s231 = sld [smem:[#allocation4 + %s36]]
        %v232 = vld [vmem:[%s195] sm:$0xff]
        %v233 = vld [vmem:[%s204] sm:$0xff]
        %v234 = vstv %s230
        %v235 = vmul.f32 %v234, %v232
        %v236 = vstv %s231
        %v237 = vmul.f32 %v236, %v233
        %v238 = vadd.f32 %v235, %v237
        %239 = vst [vmem:[%s229] sm:$0xff] %v238
        %s240 = sand.u32 %s110, 1
        %s241 = scalar_lea.sflag [#allocation7], %s240
        %s242 = sand.u32 %s110, 1
        %s243 = smul.addr %s242, 8
        %s244 = scalar_lea.vmem [#allocation10], %s243
        // Predicated region
        $region37: #{tpu_custom_call.1} parent=27 // pred_check
          %p245 = pneg %p120
        $region38: #{tpu_custom_call.1} parent=27 // pred_check_branch
          %247 = sbr.rel (%p245) target = $region40
        $region39: #{tpu_custom_call.1} parent=27 // pred_region
          %s249 = ssub.s32 128, 128
          %250 = vsyncadd %s241, %s249
          %s251 = smul.addr %s37, 4
          %s252 = smul.addr %s36, 4
          %s253 = sadd.s32 %s251, %s252
          %s254 = smul.addr %s253, 32
          %s255 = scalar_lea.hbm %s4, %s254
          %s257 = sshll.u32 %s244, 4
          %s258 = int_to_ptr.vmem [resolvable:$true] %s257
          %260 = dma.vmem_to_hbm [thread:$0]  %s258, 128, %s255, %s241
        $region40: #{tpu_custom_call.1} parent=27 // pred_fallthru
          _
      $region28: #{tpu_custom_call.1} parent=5 // pred_fallthru
        _
      %p261 = scmp.le.s32.totalorder 2, %s27
      // Predicated region
      $region41: #{tpu_custom_call.1} parent=5 // pred_check
        %p262 = pneg %p261
      $region42: #{tpu_custom_call.1} parent=5 // pred_check_branch
        %264 = sbr.rel (%p262) target = $region44
      $region43: #{tpu_custom_call.1} parent=5 // pred_region
        %s265 = ssub.s32 %s27, 2
        // Predicated region
        $region45: #{tpu_custom_call.1} parent=43 // pred_check
          %p266 = pneg %p126
        $region46: #{tpu_custom_call.1} parent=43 // pred_check_branch
          %268 = sbr.rel (%p266) target = $region48
        $region47: #{tpu_custom_call.1} parent=43 // pred_region
          %s269 = sand.u32 %s111, 1
          %s270 = scalar_lea.sflag [#allocation7], %s269
          %s271 = sand.u32 %s111, 1
          %s272 = smul.addr %s271, 8
          %s273 = scalar_lea.vmem [#allocation10], %s272
          %274 = dma.done %s270, 128
        $region48: #{tpu_custom_call.1} parent=43 // pred_fallthru
          _
      $region44: #{tpu_custom_call.1} parent=5 // pred_fallthru
        _
    $region6: #{tpu_custom_call.1} parent=1 // loop_footer
      %s31 = sadd.s32 1, %s27
    $region7: #{tpu_custom_call.1} parent=1 // loop_footer_branch
      %26 = sbr.rel target = $region3
    $region8: #{tpu_custom_call.1} parent=1 // loop_exit
      _
    %275 = vsyncpa [#allocation6], 1
    %s276 = scalar_lea.sflag [#allocation6], 1
    %277 = vsyncpa %s276, 1
    %278 = vsyncpa [#allocation9], 1
    %s279 = scalar_lea.sflag [#allocation9], 1
    %280 = vsyncpa %s279, 1
    %281 = vsyncpa [#allocation7], 1
    %s282 = scalar_lea.sflag [#allocation7], 1
    %283 = vsyncpa %s282, 1

</llo_original>
